<compile_context>
chip_gen: v5e
topology: v5e:2x2
jax: 0.10.0
libtpu: 0.0.40
codegen_flags: <defaults>
</compile_context>

<pallas_src>
import functools

import jax
import jax.numpy as jnp
from jax.experimental import pallas as pl
from jax.experimental.pallas import tpu as pltpu

LANES = 128
TARGET_BLOCK_ROWS = 4096              # 4096 * 128 * 4 B = 2 MiB per f32 input block
VMEM_LIMIT_BYTES = 32 * 1024 * 1024   # safe on v5e(128M)/v6e(128M)/v7x(64M per TC)


def _round_up(a, b):
    return ((a + b - 1) // b) * b


def _focal_loss_kernel(x_ref, t_ref, out_ref, *, alpha, gamma, n_valid,
                       block_elems, steps, needs_mask):
    c = pl.program_id(0)   # parallel axis (2 TCs on v7x, serial loop elsewhere)
    i = pl.program_id(1)   # reduction axis

    @pl.when(i == 0)
    def _init():
        out_ref[...] = jnp.zeros_like(out_ref)

    x = x_ref[...].astype(jnp.float32)
    t = t_ref[...].astype(jnp.float32)

    # Numerically stable BCE-with-logits; reuse e = exp(-|x|) for the sigmoid.
    e = jnp.exp(-jnp.abs(x))
    ce = jnp.maximum(x, 0.0) - x * t + jnp.log1p(e)
    inv = 1.0 / (1.0 + e)
    p = jnp.where(x >= 0.0, inv, e * inv)          # == sigmoid(x)
    p = jnp.clip(p, 1e-7, 1.0 - 1e-7)
    q = 1.0 - p

    if gamma == 2.0:        # common case: pure VPU multiplies, no EUP pow
        w = alpha * (q * q) + (1.0 - alpha) * (p * p)
    elif gamma == 1.0:
        w = alpha * q + (1.0 - alpha) * p
    else:
        w = alpha * jnp.power(q, gamma) + (1.0 - alpha) * jnp.power(p, gamma)
    loss = ce * w

    if needs_mask:
        # Zero padded / boundary-garbage / duplicated-overshoot elements using
        # the *unclamped* global block index (no mask input stream, no full pad).
        g = c * steps + i                          # global block index
        rem = n_valid - g * block_elems            # valid elements in this block
        row = jax.lax.broadcasted_iota(jnp.int32, loss.shape, 0)
        col = jax.lax.broadcasted_iota(jnp.int32, loss.shape, 1)
        flat = row * LANES + col
        loss = jnp.where(flat < rem, loss, 0.0)

    # Vreg-shaped partial sums (pure VPU adds); final reduce happens in wrapper.
    out_ref[...] += loss.reshape(-1, 8, LANES).sum(axis=0)


def focal_loss(inputs, targets, alpha=0.25, gamma=2):
    """Mean sigmoid focal loss over all elements, matching the PyTorch module."""
    assert inputs.shape == targets.shape
    n = int(inputs.size)
    assert n > 0

    x = inputs.reshape(-1)          # native dtype; kernel casts to f32
    t = targets.reshape(-1)

    # Pad only to a 128-lane multiple (<=127 elems) when needed for the 2-D view.
    n_lane = _round_up(n, LANES)
    if n_lane != n:
        x = jnp.pad(x, (0, n_lane - n))
        t = jnp.pad(t, (0, n_lane - n))
    rows = n_lane // LANES

    # Minimum row granularity by dtype sublane packing (f32->8, bf16->16, i8->32).
    itemsize = max(1, min(jnp.dtype(inputs.dtype).itemsize,
                          jnp.dtype(targets.dtype).itemsize))
    min_rows = 8 * max(1, 4 // itemsize)

    block_rows = TARGET_BLOCK_ROWS if rows >= TARGET_BLOCK_ROWS else _round_up(rows, min_rows)
    block_elems = block_rows * LANES

    x2 = x.reshape(rows, LANES)
    t2 = t.reshape(rows, LANES)

    num_blocks = pl.cdiv(rows, block_rows)
    num_par = 2 if num_blocks >= 2 else 1          # both TCs on v7x; no-op otherwise
    steps = pl.cdiv(num_blocks, num_par)
    coverage = num_par * steps * block_elems
    needs_mask = (coverage != n)                   # any pad / ragged / overshoot

    last_block = num_blocks - 1

    def in_index_map(c, i):
        # Clamp so a block never starts beyond the array; boundary-partial blocks
        # are handled by Pallas (unspecified pad values) + the in-kernel mask.
        return (jnp.minimum(c * steps + i, last_block), 0)

    kernel = functools.partial(
        _focal_loss_kernel,
        alpha=float(alpha), gamma=float(gamma), n_valid=n,
        block_elems=block_elems, steps=steps, needs_mask=needs_mask,
    )

    partials = pl.pallas_call(
        kernel,
        out_shape=jax.ShapeDtypeStruct((num_par * 8, LANES), jnp.float32),
        grid_spec=pltpu.PrefetchScalarGridSpec(
            num_scalar_prefetch=0,
            grid=(num_par, steps),
            in_specs=[
                pl.BlockSpec((block_rows, LANES), in_index_map),
                pl.BlockSpec((block_rows, LANES), in_index_map),
            ],
            out_specs=pl.BlockSpec((8, LANES), lambda c, i: (c, 0)),
        ),
        compiler_params=pltpu.CompilerParams(
            dimension_semantics=("parallel", "arbitrary"),
            vmem_limit_bytes=VMEM_LIMIT_BYTES,
        ),
    )(x2, t2)

    # Tiny epilogue: cross-lane reduce of (num_par*8, 128) partials + mean scale.
    return jnp.sum(partials) * (1.0 / n)


def _focal_loss_ref(inputs, targets, alpha=0.25, gamma=2):
    x = inputs.astype(jnp.float32)
    t = targets.astype(jnp.float32)
    p = jax.nn.sigmoid(x)
    ce = jnp.maximum(x, 0.0) - x * t + jnp.log1p(jnp.exp(-jnp.abs(x)))
    p = jnp.clip(p, 1e-7, 1.0 - 1e-7)
    loss = alpha * (1.0 - p) ** gamma * ce + (1.0 - alpha) * p ** gamma * ce
    return jnp.mean(loss)


if __name__ == "__main__":
    key = jax.random.PRNGKey(0)

    # Primary small test: logits over an NCHW feature map (exact lane multiple).
    k1, k2 = jax.random.split(key)
    shape = (2, 4, 16, 16)
    inputs = jax.random.normal(k1, shape, dtype=jnp.float32) * 2.0
    targets = (jax.random.uniform(k2, shape) > 0.5).astype(jnp.float32)
    out = jax.block_until_ready(focal_loss(inputs, targets, alpha=0.25, gamma=2))
    ref = _focal_loss_ref(inputs, targets, alpha=0.25, gamma=2)
    assert jnp.allclose(out, ref, rtol=1e-5, atol=1e-6), (out, ref)

    # Ragged (non-multiple-of-128) size: exercises lane-pad + in-kernel tail mask.
    k3, k4 = jax.random.split(k1)
    shape2 = (2, 3, 17, 19)
    inputs2 = jax.random.normal(k3, shape2, dtype=jnp.float32) * 2.0
    targets2 = (jax.random.uniform(k4, shape2) > 0.5).astype(jnp.float32)
    out2 = jax.block_until_ready(focal_loss(inputs2, targets2, alpha=0.25, gamma=2))
    ref2 = _focal_loss_ref(inputs2, targets2, alpha=0.25, gamma=2)
    assert jnp.allclose(out2, ref2, rtol=1e-5, atol=1e-6), (out2, ref2)

    # Multi-block: exercises 2-way parallel axis, a partial boundary block and
    # the clamped index map, with no wrapper-side padding at all.
    k5, k6 = jax.random.split(k2)
    shape3 = (4, 4, 256, 130)
    inputs3 = jax.random.normal(k5, shape3, dtype=jnp.float32) * 2.0
    targets3 = (jax.random.uniform(k6, shape3) > 0.5).astype(jnp.float32)
    out3 = jax.block_until_ready(focal_loss(inputs3, targets3, alpha=0.25, gamma=2))
    ref3 = _focal_loss_ref(inputs3, targets3, alpha=0.25, gamma=2)
    assert jnp.allclose(out3, ref3, rtol=1e-4, atol=1e-6), (out3, ref3)

    print("KERNEL_OK")
</pallas_src>

<mosaic_0001>
module attributes {stable_mosaic.version = 11 : i64} {
  func.func @_focal_loss_kernel(%arg0: i32, %arg1: i32, %arg2: memref<16x128xf32, #tpu.memory_space<vmem>>, %arg3: memref<16x128xf32, #tpu.memory_space<vmem>>, %arg4: memref<8x128xf32, #tpu.memory_space<vmem>>) attributes {dimension_semantics = [#tpu.dimension_semantics<parallel>, #tpu.dimension_semantics<arbitrary>], iteration_bounds = array<i64: 1, 1>, scalar_prefetch = 0 : i64, scratch_operands = 0 : i64, tpu.core_type = #tpu.core_type<tc>, window_params = [{transform_indices = @transform_0, window_bounds = array<i64: 16, 128>}, {transform_indices = @transform_1, window_bounds = array<i64: 16, 128>}, {transform_indices = @transform_2, window_bounds = array<i64: 8, 128>}]} {
    %c0_i32 = arith.constant 0 : i32
    %0 = arith.cmpi eq, %arg1, %c0_i32 : i32
    %1 = arith.extui %0 : i1 to i32
    %c0_i32_0 = arith.constant 0 : i32
    %2 = arith.cmpi ne, %1, %c0_i32_0 : i32
    scf.if %2 {
      %cst_18 = arith.constant 0.000000e+00 : f32
      %42 = vector.broadcast %cst_18 : f32 to vector<8x128xf32>
      %c0_19 = arith.constant 0 : index
      %c0_20 = arith.constant 0 : index
      %43 = vector.load %arg4[%c0_19, %c0_20] : memref<8x128xf32, #tpu.memory_space<vmem>>, vector<8x128xf32>
      tpu.vector_store %arg4[%c0_19, %c0_20], %42 {strides = array<i32>} : memref<8x128xf32, #tpu.memory_space<vmem>>, vector<8x128xf32>,
    } else {
    }
    %c0 = arith.constant 0 : index
    %c0_1 = arith.constant 0 : index
    %3 = vector.load %arg2[%c0, %c0_1] : memref<16x128xf32, #tpu.memory_space<vmem>>, vector<16x128xf32>
    %c0_2 = arith.constant 0 : index
    %c0_3 = arith.constant 0 : index
    %4 = vector.load %arg3[%c0_2, %c0_3] : memref<16x128xf32, #tpu.memory_space<vmem>>, vector<16x128xf32>
    %5 = math.absf %3 : vector<16x128xf32>
    %cst = arith.constant 0.000000e+00 : f32
    %6 = vector.broadcast %cst : f32 to vector<16x128xf32>
    %7 = arith.subf %6, %5 : vector<16x128xf32>
    %8 = math.exp %7 : vector<16x128xf32>
    %cst_4 = arith.constant 0.000000e+00 : f32
    %9 = vector.broadcast %cst_4 : f32 to vector<16x128xf32>
    %10 = arith.maximumf %3, %9 : vector<16x128xf32>
    %11 = arith.mulf %3, %4 : vector<16x128xf32>
    %12 = arith.subf %10, %11 : vector<16x128xf32>
    %13 = math.log1p %8 : vector<16x128xf32>
    %14 = arith.addf %12, %13 : vector<16x128xf32>
    %cst_5 = arith.constant 1.000000e+00 : f32
    %15 = vector.broadcast %cst_5 : f32 to vector<16x128xf32>
    %16 = arith.addf %15, %8 : vector<16x128xf32>
    %cst_6 = arith.constant 1.000000e+00 : f32
    %17 = vector.broadcast %cst_6 : f32 to vector<16x128xf32>
    %18 = arith.divf %17, %16 : vector<16x128xf32>
    %cst_7 = arith.constant 0.000000e+00 : f32
    %19 = vector.broadcast %cst_7 : f32 to vector<16x128xf32>
    %20 = arith.cmpf oge, %3, %19 : vector<16x128xf32>
    %21 = arith.mulf %8, %18 : vector<16x128xf32>
    %22 = arith.select %20, %18, %21 : vector<16x128xi1>, vector<16x128xf32>
    %cst_8 = arith.constant 1.000000e-07 : f32
    %cst_9 = arith.constant 0.99999988 : f32
    %23 = vector.broadcast %cst_8 : f32 to vector<16x128xf32>
    %24 = arith.maximumf %23, %22 : vector<16x128xf32>
    %25 = vector.broadcast %cst_9 : f32 to vector<16x128xf32>
    %26 = arith.minimumf %25, %24 : vector<16x128xf32>
    %cst_10 = arith.constant 1.000000e+00 : f32
    %27 = vector.broadcast %cst_10 : f32 to vector<16x128xf32>
    %28 = arith.subf %27, %26 : vector<16x128xf32>
    %29 = arith.mulf %28, %28 : vector<16x128xf32>
    %cst_11 = arith.constant 2.500000e-01 : f32
    %30 = vector.broadcast %cst_11 : f32 to vector<16x128xf32>
    %31 = arith.mulf %30, %29 : vector<16x128xf32>
    %32 = arith.mulf %26, %26 : vector<16x128xf32>
    %cst_12 = arith.constant 7.500000e-01 : f32
    %33 = vector.broadcast %cst_12 : f32 to vector<16x128xf32>
    %34 = arith.mulf %33, %32 : vector<16x128xf32>
    %35 = arith.addf %31, %34 : vector<16x128xf32>
    %36 = arith.mulf %14, %35 : vector<16x128xf32>
    %c0_13 = arith.constant 0 : index
    %c0_14 = arith.constant 0 : index
    %37 = vector.load %arg4[%c0_13, %c0_14] : memref<8x128xf32, #tpu.memory_space<vmem>>, vector<8x128xf32>
    %38 = vector.shape_cast %36 : vector<16x128xf32> to vector<2x8x128xf32>
    %cst_15 = arith.constant dense<0.000000e+00> : vector<8x128xf32>
    %39 = vector.multi_reduction <add>, %38, %cst_15 [0] : vector<2x8x128xf32> to vector<8x128xf32>
    %40 = arith.addf %37, %39 : vector<8x128xf32>
    %c0_16 = arith.constant 0 : index
    %c0_17 = arith.constant 0 : index
    %41 = vector.load %arg4[%c0_16, %c0_17] : memref<8x128xf32, #tpu.memory_space<vmem>>, vector<8x128xf32>
    tpu.vector_store %arg4[%c0_16, %c0_17], %40 {strides = array<i32>} : memref<8x128xf32, #tpu.memory_space<vmem>>, vector<8x128xf32>,
    return
  }
  func.func @transform_0(%arg0: i32, %arg1: i32) -> (i32, i32) {
    %c1_i32 = arith.constant 1 : i32
    %0 = arith.muli %arg0, %c1_i32 : i32
    %1 = arith.addi %0, %arg1 : i32
    %c0_i32 = arith.constant 0 : i32
    %2 = arith.minsi %1, %c0_i32 : i32
    %c0_i32_0 = arith.constant 0 : i32
    %c0_i32_1 = arith.constant 0 : i32
    return %2, %c0_i32_0 : i32, i32
  }
  func.func @transform_1(%arg0: i32, %arg1: i32) -> (i32, i32) {
    %c1_i32 = arith.constant 1 : i32
    %0 = arith.muli %arg0, %c1_i32 : i32
    %1 = arith.addi %0, %arg1 : i32
    %c0_i32 = arith.constant 0 : i32
    %2 = arith.minsi %1, %c0_i32 : i32
    %c0_i32_0 = arith.constant 0 : i32
    %c0_i32_1 = arith.constant 0 : i32
    return %2, %c0_i32_0 : i32, i32
  }
  func.func @transform_2(%arg0: i32, %arg1: i32) -> (i32, i32) {
    %c0_i32 = arith.constant 0 : i32
    %c0_i32_0 = arith.constant 0 : i32
    return %arg0, %c0_i32 : i32, i32
  }
}

</mosaic_0001>

<llo_original>
// kernel: tpu_custom_call.1
$region0: #{tpu_custom_call.1}
  #allocation0 [shape = 'u32[]', space=smem, size = 0x4, offset = 0x4, fixed_abs, tag = 'smem constant byte address 0x4 - core index']
  #allocation1 [shape = 'u32[72,128]{1,0:T(1,128)}', space=vmem, size = 0x9000, scoped, tag = 'internal scratch']
  %s0 = inlined_call_operand.hbm [shape: f32[16,128], index: 0, kind: input, shape index: {}]
  %s1 = inlined_call_operand.hbm [shape: f32[16,128], index: 1, kind: input, shape index: {}]
  %s2 = inlined_call_operand.hbm [shape: f32[8,128], index: 2, kind: output, shape index: {}]
  %s3 = sld [smem:[#allocation0]]
  $region30: #{tpu_custom_call.1} parent=0
    _
  %s5 = ssub.s32 1, %s3
  %s6 = scalar_select 0, %s5, %s3
  $region1: #{tpu_custom_call.1} parent=0
    #allocation2 [shape = 'u8[8192]{0}', space=vmem, size = 0x2000, scoped, tag = 'input window, operand 0, single buffered']
    #allocation3 [shape = 's32[1]{0}', space=sflag, size = 0x4, scoped, tag = 'scoped memory for tpu_custom_call.1']
    #allocation4 [shape = 's32[1]{0}', space=sflag, size = 0x4, scoped, tag = 'scoped memory for tpu_custom_call.1']
    #allocation5 [shape = 'u8[8192]{0}', space=vmem, size = 0x2000, scoped, tag = 'input window, operand 1, single buffered']
    #allocation6 [shape = 's32[1]{0}', space=sflag, size = 0x4, scoped, tag = 'scoped memory for tpu_custom_call.1']
    #allocation7 [shape = 'u8[4096]{0}', space=vmem, size = 0x1000, scoped, tag = 'output window, operand 0, single buffered']
    %7 = vsyncpa [#allocation3], 0
    %8 = vsyncpa [#allocation6], 0
    %9 = vsyncpa [#allocation4], 0
    // Predicated region
    $region2: #{tpu_custom_call.1} parent=1 // pred_check
      _
    $region3: #{tpu_custom_call.1} parent=1 // pred_check_branch
      %11 = sbr.rel (0) target = $region5
    $region4: #{tpu_custom_call.1} parent=1 // pred_region
      %s12 = sadd.s32 0, 0
      %p13 = scmp.lt.s32.totalorder %s12, 0
      %s14 = scalar_select %p13, %s12, 0
      %s15 = smul.u32 2, %s14
      %17 = vsyncadd [#allocation3], 0
      %s18 = smul.addr %s15, 8
      %s19 = scalar_lea.hbm %s0, %s18
      %s20 = sshll.u32 %s19, 4
      %s21 = int_to_ptr.hbm [resolvable:$true] %s20
      %s22 = sshll.u32 [#allocation2], 4
      %s23 = int_to_ptr.vmem [resolvable:$true] %s22
      %28 = dma.hbm_to_vmem [thread:$0]  %s21, 256, %s23, [#allocation3], 128, 128, 8
    $region5: #{tpu_custom_call.1} parent=1 // pred_fallthru
      _
    // Predicated region
    $region6: #{tpu_custom_call.1} parent=1 // pred_check
      _
    $region7: #{tpu_custom_call.1} parent=1 // pred_check_branch
      %30 = sbr.rel (0) target = $region9
    $region8: #{tpu_custom_call.1} parent=1 // pred_region
      %s31 = sadd.s32 0, 0
      %p32 = scmp.lt.s32.totalorder %s31, 0
      %s33 = scalar_select %p32, %s31, 0
      %s34 = smul.u32 2, %s33
      %36 = vsyncadd [#allocation6], 0
      %s37 = smul.addr %s34, 8
      %s38 = scalar_lea.hbm %s1, %s37
      %s39 = sshll.u32 %s38, 4
      %s40 = int_to_ptr.hbm [resolvable:$true] %s39
      %s41 = sshll.u32 [#allocation5], 4
      %s42 = int_to_ptr.vmem [resolvable:$true] %s41
      %47 = dma.hbm_to_vmem [thread:$0]  %s40, 256, %s42, [#allocation6], 128, 128, 8
    $region9: #{tpu_custom_call.1} parent=1 // pred_fallthru
      _
    // Predicated region
    $region10: #{tpu_custom_call.1} parent=1 // pred_check
      _
    $region11: #{tpu_custom_call.1} parent=1 // pred_check_branch
      %49 = sbr.rel (0) target = $region13
    $region12: #{tpu_custom_call.1} parent=1 // pred_region
      %51 = dma.done [#allocation3], 256
    $region13: #{tpu_custom_call.1} parent=1 // pred_fallthru
      _
    // Predicated region
    $region14: #{tpu_custom_call.1} parent=1 // pred_check
      _
    $region15: #{tpu_custom_call.1} parent=1 // pred_check_branch
      %53 = sbr.rel (0) target = $region17
    $region16: #{tpu_custom_call.1} parent=1 // pred_region
      %55 = dma.done [#allocation6], 256
    $region17: #{tpu_custom_call.1} parent=1 // pred_fallthru
      _
    %s56 = sadd.s32 0, 0
    %p57 = scmp.lt.s32.totalorder %s56, 0
    %s58 = scalar_select %p57, %s56, 0
    %s59 = smul.u32 2, %s58
    %s60 = sadd.s32 0, 0
    %p61 = scmp.lt.s32.totalorder %s60, 0
    %s62 = scalar_select %p61, %s60, 0
    %s63 = smul.u32 2, %s62
    %p64 = scmp.eq.s32.totalorder 0, 0
    // Predicated region
    $region18: #{tpu_custom_call.1} parent=1 // pred_check
      %p65 = pneg %p64
    $region19: #{tpu_custom_call.1} parent=1 // pred_check_branch
      %67 = sbr.rel (%p65) target = $region21
    $region20: #{tpu_custom_call.1} parent=1 // pred_region
      %68 = vst [vmem:[#allocation7] sm:$0xff] 0.0
    $region21: #{tpu_custom_call.1} parent=1 // pred_fallthru
      _
    %v69 = vld [vmem:[#allocation2] sm:$0xff]
    %v70 = vld [vmem:[#allocation2 + $0x8] sm:$0xff]
    %v71 = vld [vmem:[#allocation5] sm:$0xff]
    %v72 = vld [vmem:[#allocation5 + $0x8] sm:$0xff]
    %v73 = vand.u32 2147483647, %v69
    %v74 = vand.u32 2147483647, %v70
    %v75 = vsub.f32 0.0, %v73
    %v76 = vsub.f32 0.0, %v74
    %v77 = vmul.f32 %v75, 1.442695
    %v78 = vpow.pop %v77
    %v79 = vmul.f32 %v76, 1.442695
    %v80 = vpow.pop %v79
    %v81 = vmax.f32 %v69, 0.0
    %v82 = vmax.f32 %v70, 0.0
    %v83 = vmul.f32 %v69, %v71
    %v84 = vmul.f32 %v70, %v72
    %v85 = vsub.f32 %v81, %v83
    %v86 = vsub.f32 %v82, %v84
    %v87 = vadd.f32 %v78, 1.0
    %v88 = vlog2.pop %v87
    %v89 = vmul.f32 %v88, 0.6931472
    %v90 = vmul.f32 -0.5, %v78
    %v91 = vadd.f32 %v90, 1.0
    %v92 = vmul.f32 %v91, %v78
    %v93 = vand.u32 2147483647, %v78
    %vm94 = vcmp.lt.f32.partialorder %v93, 0.0004427343
    %v95 = vsel %vm94, %v92, %v89
    %v96 = vadd.f32 %v80, 1.0
    %v97 = vlog2.pop %v96
    %v98 = vmul.f32 %v97, 0.6931472
    %v99 = vmul.f32 -0.5, %v80
    %v100 = vadd.f32 %v99, 1.0
    %v101 = vmul.f32 %v100, %v80
    %v102 = vand.u32 2147483647, %v80
    %vm103 = vcmp.lt.f32.partialorder %v102, 0.0004427343
    %v104 = vsel %vm103, %v101, %v98
    %v105 = vadd.f32 %v85, %v95
    %v106 = vadd.f32 %v86, %v104
    %v107 = vadd.f32 %v78, 1.0
    %v108 = vadd.f32 %v80, 1.0
    %v109 = vrcp.pop %v107
    %v110 = vmul.f32 %v107, %v109
    %v111 = vsub.f32 1.0, %v110
    %v112 = vmul.f32 %v109, %v111
    %v113 = vadd.f32 %v109, %v112
    %vm114 = vweird.f32 %v107
    %vm115 = vweird.f32 %v109
    %vm116 = vmor %vm114, %vm115
    %v117 = vsel %vm116, %v109, %v113
    %v118 = vand.u32 2147483647, %v107
    %vm119 = vcmp.eq.f32.partialorder %v118, 8.507059e+37
    %v120 = vand.u32 %v107, 2147483648
    %v121 = vor.u32 1.1754944e-38, %v120
    %v122 = vsel %vm119, %v121, %v117
    %v123 = vmul.f32 1.0, %v122
    %v124 = vrcp.pop %v108
    %v125 = vmul.f32 %v108, %v124
    %v126 = vsub.f32 1.0, %v125
    %v127 = vmul.f32 %v124, %v126
    %v128 = vadd.f32 %v124, %v127
    %vm129 = vweird.f32 %v108
    %vm130 = vweird.f32 %v124
    %vm131 = vmor %vm129, %vm130
    %v132 = vsel %vm131, %v124, %v128
    %v133 = vand.u32 2147483647, %v108
    %vm134 = vcmp.eq.f32.partialorder %v133, 8.507059e+37
    %v135 = vand.u32 %v108, 2147483648
    %v136 = vor.u32 1.1754944e-38, %v135
    %v137 = vsel %vm134, %v136, %v132
    %v138 = vmul.f32 1.0, %v137
    %vm139 = vcmp.ge.f32.partialorder %v69, 0.0
    %vm140 = vcmp.ge.f32.partialorder %v70, 0.0
    %v141 = vmul.f32 %v78, %v123
    %v142 = vmul.f32 %v80, %v138
    %v143 = vsel %vm139, %v123, %v141
    %v144 = vsel %vm140, %v138, %v142
    %v145 = vmax.f32 %v143, 1e-07
    %v146 = vmax.f32 %v144, 1e-07
    %v147 = vmin.f32 %v145, 0.9999999
    %v148 = vmin.f32 %v146, 0.9999999
    %v149 = vsub.f32 1.0, %v147
    %v150 = vsub.f32 1.0, %v148
    %v151 = vmul.f32 %v149, %v149
    %v152 = vmul.f32 %v150, %v150
    %v153 = vmul.f32 %v151, 0.25
    %v154 = vmul.f32 %v152, 0.25
    %v155 = vmul.f32 %v147, %v147
    %v156 = vmul.f32 %v148, %v148
    %v157 = vmul.f32 %v155, 0.75
    %v158 = vmul.f32 %v156, 0.75
    %v159 = vadd.f32 %v153, %v157
    %v160 = vadd.f32 %v154, %v158
    %v161 = vmul.f32 %v105, %v159
    %v162 = vmul.f32 %v106, %v160
    %v163 = vld [vmem:[#allocation7] sm:$0xff]
    %v164 = vadd.f32 %v161, %v162
    %v165 = vadd.f32 %v163, %v164
    %166 = vst [vmem:[#allocation7] sm:$0xff] %v165
    // Predicated region
    $region22: #{tpu_custom_call.1} parent=1 // pred_check
      _
    $region23: #{tpu_custom_call.1} parent=1 // pred_check_branch
      %168 = sbr.rel (0) target = $region25
    $region24: #{tpu_custom_call.1} parent=1 // pred_region
      %170 = vsyncadd [#allocation4], 0
      %s172 = sshll.u32 [#allocation7], 4
      %s173 = int_to_ptr.vmem [resolvable:$true] %s172
      %s174 = sshll.u32 %s2, 4
      %s175 = int_to_ptr.hbm [resolvable:$true] %s174
      %177 = dma.vmem_to_hbm [thread:$0]  %s173, 128, %s175, [#allocation4]
    $region25: #{tpu_custom_call.1} parent=1 // pred_fallthru
      _
    // Predicated region
    $region26: #{tpu_custom_call.1} parent=1 // pred_check
      _
    $region27: #{tpu_custom_call.1} parent=1 // pred_check_branch
      %179 = sbr.rel (0) target = $region29
    $region28: #{tpu_custom_call.1} parent=1 // pred_region
      %181 = dma.done [#allocation4], 128
    $region29: #{tpu_custom_call.1} parent=1 // pred_fallthru
      _
    %182 = vsyncpa [#allocation3], 1
    %183 = vsyncpa [#allocation6], 1
    %184 = vsyncpa [#allocation4], 1

</llo_original>
